<compile_context>
chip_gen: v7x
topology: tpu7x:2x2x1
jax: 0.10.0
libtpu: 0.0.40
codegen_flags: <defaults>
</compile_context>

<pallas_src>
import functools

import jax
import jax.numpy as jnp
from jax import lax
from jax.experimental import pallas as pl
from jax.experimental.pallas import tpu as pltpu


# ----------------------------------------------------------------------------- kernel
def _lane_shift(x, off, L):
    """shifted[:, n] = x[:, (n + off) mod L]  (static shift, pure jnp).

    Wrapped lanes are zeroed afterwards by the boundary mask, so the wrap
    content never affects the result.
    """
    s = off % L
    if s == 0:
        return x
    return jnp.concatenate([x[:, s:], x[:, :s]], axis=1)


def bottleneck_kernel(x_ref, mask_ref, w1_ref, b1_ref, w2_ref, b2_ref,
                      w3_ref, b3_ref, o_ref, *scratch, W, fuse_taps):
    L = x_ref.shape[-1]                      # H*W lanes (one sample per grid step)

    x = x_ref[...]                           # (Cin, L) bf16

    # --- conv1 (1x1, no bias) + bn1 (scale folded into w1) + relu -------------
    h1 = jnp.dot(w1_ref[...], x, preferred_element_type=jnp.float32)        # (P, L)
    h1 = jnp.maximum(h1 + b1_ref[...], 0.0)
    h1b = h1.astype(jnp.bfloat16)
    P = h1b.shape[0]

    # --- conv2 (3x3, pad=1, stride=1, no bias) + bn2 + relu -------------------
    # tap t = (dy+1)*3 + (dx+1): tap_t[:, n] = h1[:, n + dy*W + dx], zero outside
    # the image.  Boundary masks for the 8 non-center taps come precomputed in
    # mask_ref ((8, L) bf16, grid-invariant resident input).
    offsets = [(dy, dx) for dy in (-1, 0, 1) for dx in (-1, 0, 1)]

    if fuse_taps:
        stacked_ref = scratch[0]             # (9P, L) bf16 VMEM scratch
        m = 0
        for t, (dy, dx) in enumerate(offsets):
            if dy == 0 and dx == 0:
                tap = h1b
            else:
                tap = _lane_shift(h1b, dy * W + dx, L) * mask_ref[m:m + 1, :]
                m += 1
            stacked_ref[t * P:(t + 1) * P, :] = tap
        # single MXU call: (P, 9P) @ (9P, L)
        acc = jnp.dot(w2_ref[...], stacked_ref[...],
                      preferred_element_type=jnp.float32)                   # (P, L)
    else:
        # planes not bf16-sublane-tile aligned (toy sizes): accumulate 9 matmuls.
        m = 0
        acc = None
        for t, (dy, dx) in enumerate(offsets):
            if dy == 0 and dx == 0:
                tap = h1b
            else:
                tap = _lane_shift(h1b, dy * W + dx, L) * mask_ref[m:m + 1, :]
                m += 1
            contrib = jnp.dot(w2_ref[t], tap, preferred_element_type=jnp.float32)
            acc = contrib if acc is None else acc + contrib
    h2 = jnp.maximum(acc + b2_ref[...], 0.0)                                # (P, L)

    # --- conv3 (1x1, no bias) + bn3 + identity residual + relu ----------------
    h3 = jnp.dot(w3_ref[...], h2.astype(jnp.bfloat16),
                 preferred_element_type=jnp.float32)                        # (Cout, L)
    h3 = h3 + b3_ref[...] + x.astype(jnp.float32)        # residual: Cin == Cout
    o_ref[...] = jnp.maximum(h3, 0.0).astype(o_ref.dtype)


# --------------------------------------------------------------------------- params
def init_params(key, inplanes, planes):
    cout = planes * 4
    ks = jax.random.split(key, 6)
    conv1 = jax.random.normal(ks[0], (planes, inplanes, 1, 1), jnp.float32) * 0.2
    conv2 = jax.random.normal(ks[1], (planes, planes, 3, 3), jnp.float32) * 0.2
    conv3 = jax.random.normal(ks[2], (cout, planes, 1, 1), jnp.float32) * 0.2

    def bn(k, c):
        k1, k2, k3, k4 = jax.random.split(k, 4)
        gamma = 1.0 + 0.1 * jax.random.normal(k1, (c,), jnp.float32)
        beta = 0.1 * jax.random.normal(k2, (c,), jnp.float32)
        mean = 0.1 * jax.random.normal(k3, (c,), jnp.float32)
        var = 1.0 + 0.1 * jnp.abs(jax.random.normal(k4, (c,), jnp.float32))
        return gamma, beta, mean, var

    return dict(conv1=conv1, conv2=conv2, conv3=conv3,
                bn1=bn(ks[3], planes), bn2=bn(ks[4], planes), bn3=bn(ks[5], cout))


def _fold_bn(gamma, beta, mean, var, eps):
    scale = gamma / jnp.sqrt(var + eps)
    bias = beta - mean * scale
    return scale[:, None], bias[:, None]     # (C, 1): broadcast over lanes


# -------------------------------------------------------------------------- wrapper
@functools.partial(jax.jit, static_argnames=("eps",))
def bottleneck_forward(x_nchw, params, eps=1e-5):
    N, Cin, H, W = x_nchw.shape
    P = params["conv1"].shape[0]
    Cout = params["conv3"].shape[0]
    HW = H * W
    assert Cin == Cout, "identity shortcut requires inplanes == planes * 4"

    # Fold BN (inference) scales into the conv weights; only biases go to the kernel.
    s1, b1 = _fold_bn(*params["bn1"], eps)
    s2, b2 = _fold_bn(*params["bn2"], eps)
    s3, b3 = _fold_bn(*params["bn3"], eps)

    w1 = (params["conv1"][:, :, 0, 0] * s1).astype(jnp.bfloat16)            # (P, Cin)
    w3 = (params["conv3"][:, :, 0, 0] * s3).astype(jnp.bfloat16)            # (Cout, P)

    fuse_taps = (P % 16 == 0)   # bf16 sublane tile -> aligned scratch writes
    w2_oihw = params["conv2"]                                               # (P, P, 3, 3)
    if fuse_taps:
        w2 = (jnp.transpose(w2_oihw, (0, 2, 3, 1)).reshape(P, 9 * P)
              * s2).astype(jnp.bfloat16)                                    # (P, 9P)
    else:
        w2 = (jnp.transpose(w2_oihw, (2, 3, 0, 1)).reshape(9, P, P)
              * s2[:, 0][None, :, None]).astype(jnp.bfloat16)               # (9, P, P)

    # Precompute the 8 zero-padding boundary masks (grid-invariant, tiny).
    hw_idx = jnp.arange(HW, dtype=jnp.int32)
    hh = hw_idx // W
    ww = hw_idx % W
    masks = []
    for dy in (-1, 0, 1):
        for dx in (-1, 0, 1):
            if dy == 0 and dx == 0:
                continue
            valid = ((hh + dy >= 0) & (hh + dy < H) &
                     (ww + dx >= 0) & (ww + dx < W))
            masks.append(valid)
    mask = jnp.stack(masks, axis=0).astype(jnp.bfloat16)                    # (8, HW)

    # Free reshape (no transpose) + bf16 streaming of the activation.
    x3d = x_nchw.reshape(N, Cin, HW).astype(jnp.bfloat16)

    kernel = functools.partial(bottleneck_kernel, W=W, fuse_taps=fuse_taps)
    scratch_shapes = [pltpu.VMEM((9 * P, HW), jnp.bfloat16)] if fuse_taps else []

    # NOTE: for real ResNet shapes (Cin up to 2048, HW up to 3136) the per-step
    # footprint (bf16 in/out blocks + weights + (9P, HW) scratch) stays well under
    # the default scoped-VMEM limit on v5e/v6e/v7x, so vmem_limit_bytes is left
    # at its default here.
    out3d = pl.pallas_call(
        kernel,
        out_shape=jax.ShapeDtypeStruct((N, Cout, HW), x_nchw.dtype),
        grid_spec=pltpu.PrefetchScalarGridSpec(
            num_scalar_prefetch=0,
            grid=(N,),
            in_specs=[
                pl.BlockSpec((None, Cin, HW), lambda n: (n, 0, 0)),   # x: one sample
                pl.BlockSpec((8, HW), lambda n: (0, 0)),              # boundary masks
                pl.BlockSpec(w1.shape, lambda n: (0, 0)),
                pl.BlockSpec(b1.shape, lambda n: (0, 0)),
                pl.BlockSpec(w2.shape, lambda n: (0,) * w2.ndim),
                pl.BlockSpec(b2.shape, lambda n: (0, 0)),
                pl.BlockSpec(w3.shape, lambda n: (0, 0)),
                pl.BlockSpec(b3.shape, lambda n: (0, 0)),
            ],
            out_specs=pl.BlockSpec((None, Cout, HW), lambda n: (n, 0, 0)),
            scratch_shapes=scratch_shapes,
        ),
        compiler_params=pltpu.CompilerParams(
            dimension_semantics=("parallel",)),
    )(x3d, mask, w1, b1, w2, b2, w3, b3)

    return out3d.reshape(N, Cout, H, W)


# ------------------------------------------------------------------ pure-JAX reference
def bottleneck_ref(x, params, eps=1e-5):
    def bn(y, g, b, m, v):
        return ((y - m[None, :, None, None]) / jnp.sqrt(v[None, :, None, None] + eps)
                * g[None, :, None, None] + b[None, :, None, None])

    def conv(y, w, pad):
        return lax.conv_general_dilated(
            y, w, (1, 1), [(pad, pad), (pad, pad)],
            dimension_numbers=("NCHW", "OIHW", "NCHW"))

    out = jax.nn.relu(bn(conv(x, params["conv1"], 0), *params["bn1"]))
    out = jax.nn.relu(bn(conv(out, params["conv2"], 1), *params["bn2"]))
    out = bn(conv(out, params["conv3"], 0), *params["bn3"])
    return jax.nn.relu(out + x)


# ------------------------------------------------------------------------------ main
if __name__ == "__main__":
    key = jax.random.PRNGKey(0)
    N, H, W = 2, 16, 16

    # planes=16 exercises the fused (single-matmul, VMEM-scratch) conv2 path;
    # planes=4 exercises the unaligned 9-accumulate fallback path.
    for planes in (16, 4):
        inplanes = planes * 4   # identity shortcut requires inplanes == planes * 4
        kcase = jax.random.fold_in(key, planes)
        kx, kp = jax.random.split(kcase)
        x = jax.random.normal(kx, (N, inplanes, H, W), jnp.float32)
        params = init_params(kp, inplanes, planes)

        out = jax.block_until_ready(bottleneck_forward(x, params))
        ref = bottleneck_ref(x, params)
        assert out.shape == ref.shape == (N, planes * 4, H, W)
        max_err = float(jnp.max(jnp.abs(out - ref)))
        # bf16 weights + bf16 activations with f32 MXU accumulation: expected max
        # abs err ~1e-2; semantic bugs (wrong shift direction / missing pad mask /
        # bad weight layout) would be O(1).
        assert max_err < 1e-1, f"planes={planes}: kernel/reference mismatch max_err={max_err}"

    print("KERNEL_OK")
</pallas_src>

<mosaic_0001>
module attributes {stable_mosaic.version = 11 : i64} {
  func.func @bottleneck_kernel(%arg0: i32, %arg1: memref<1x64x256xbf16, #tpu.memory_space<vmem>>, %arg2: memref<8x256xbf16, #tpu.memory_space<vmem>>, %arg3: memref<16x64xbf16, #tpu.memory_space<vmem>>, %arg4: memref<16x1xf32, #tpu.memory_space<vmem>>, %arg5: memref<16x144xbf16, #tpu.memory_space<vmem>>, %arg6: memref<16x1xf32, #tpu.memory_space<vmem>>, %arg7: memref<64x16xbf16, #tpu.memory_space<vmem>>, %arg8: memref<64x1xf32, #tpu.memory_space<vmem>>, %arg9: memref<1x64x256xf32, #tpu.memory_space<vmem>>, %arg10: memref<144x256xbf16, #tpu.memory_space<vmem>>) attributes {dimension_semantics = [#tpu.dimension_semantics<parallel>], iteration_bounds = array<i64: 2>, scalar_prefetch = 0 : i64, scratch_operands = 1 : i64, tpu.core_type = #tpu.core_type<tc>, window_params = [{transform_indices = @transform_0, window_bounds = array<i64: 1, 64, 256>}, {pipeline_mode = #tpu.pipeline_mode<synchronous>, transform_indices = @transform_1, window_bounds = array<i64: 8, 256>}, {pipeline_mode = #tpu.pipeline_mode<synchronous>, transform_indices = @transform_2, window_bounds = array<i64: 16, 64>}, {pipeline_mode = #tpu.pipeline_mode<synchronous>, transform_indices = @transform_3, window_bounds = array<i64: 16, 1>}, {pipeline_mode = #tpu.pipeline_mode<synchronous>, transform_indices = @transform_4, window_bounds = array<i64: 16, 144>}, {pipeline_mode = #tpu.pipeline_mode<synchronous>, transform_indices = @transform_5, window_bounds = array<i64: 16, 1>}, {pipeline_mode = #tpu.pipeline_mode<synchronous>, transform_indices = @transform_6, window_bounds = array<i64: 64, 16>}, {pipeline_mode = #tpu.pipeline_mode<synchronous>, transform_indices = @transform_7, window_bounds = array<i64: 64, 1>}, {transform_indices = @transform_8, window_bounds = array<i64: 1, 64, 256>}]} {
    %c0 = arith.constant 0 : index
    %c0_0 = arith.constant 0 : index
    %c0_1 = arith.constant 0 : index
    %0 = vector.load %arg1[%c0, %c0_0, %c0_1] : memref<1x64x256xbf16, #tpu.memory_space<vmem>>, vector<1x64x256xbf16>
    %1 = vector.shape_cast %0 : vector<1x64x256xbf16> to vector<64x256xbf16>
    %c0_2 = arith.constant 0 : index
    %c0_3 = arith.constant 0 : index
    %2 = vector.load %arg3[%c0_2, %c0_3] : memref<16x64xbf16, #tpu.memory_space<vmem>>, vector<16x64xbf16>
    %cst = arith.constant dense<0.000000e+00> : vector<16x256xf32>
    %3 = tpu.matmul %2, %1, %cst {dimension_numbers = #tpu.dot_dimension_numbers<[1], [0], [0], [1], [0, 0, 1, 1], [], []>} : vector<16x64xbf16>, vector<64x256xbf16>, vector<16x256xf32> -> vector<16x256xf32>
    %c0_4 = arith.constant 0 : index
    %c0_5 = arith.constant 0 : index
    %4 = vector.load %arg4[%c0_4, %c0_5] : memref<16x1xf32, #tpu.memory_space<vmem>>, vector<16x1xf32>
    %5 = vector.broadcast %4 : vector<16x1xf32> to vector<16x256xf32>
    %6 = arith.addf %3, %5 : vector<16x256xf32>
    %cst_6 = arith.constant 0.000000e+00 : f32
    %7 = vector.broadcast %cst_6 : f32 to vector<16x256xf32>
    %8 = arith.maximumf %6, %7 : vector<16x256xf32>
    %9 = arith.truncf %8 : vector<16x256xf32> to vector<16x256xbf16>
    %10 = vector.extract_strided_slice %9 {offsets = [0, 239], sizes = [16, 17], strides = [1, 1]} : vector<16x256xbf16> to vector<16x17xbf16>
    %11 = vector.extract_strided_slice %9 {offsets = [0, 0], sizes = [16, 239], strides = [1, 1]} : vector<16x256xbf16> to vector<16x239xbf16>
    %12 = tpu.concatenate %10, %11 in 1 : vector<16x17xbf16>, vector<16x239xbf16> -> vector<16x256xbf16>
    %c0_7 = arith.constant 0 : index
    %c0_8 = arith.constant 0 : index
    %13 = vector.load %arg2[%c0_7, %c0_8] : memref<8x256xbf16, #tpu.memory_space<vmem>>, vector<1x256xbf16>
    %14 = vector.broadcast %13 : vector<1x256xbf16> to vector<16x256xbf16>
    %15 = arith.mulf %12, %14 : vector<16x256xbf16>
    %c0_9 = arith.constant 0 : index
    %c0_10 = arith.constant 0 : index
    %16 = vector.load %arg10[%c0_9, %c0_10] : memref<144x256xbf16, #tpu.memory_space<vmem>>, vector<16x256xbf16>
    tpu.vector_store %arg10[%c0_9, %c0_10], %15 {strides = array<i32>} : memref<144x256xbf16, #tpu.memory_space<vmem>>, vector<16x256xbf16>,
    %17 = vector.extract_strided_slice %9 {offsets = [0, 240], sizes = [16, 16], strides = [1, 1]} : vector<16x256xbf16> to vector<16x16xbf16>
    %18 = vector.extract_strided_slice %9 {offsets = [0, 0], sizes = [16, 240], strides = [1, 1]} : vector<16x256xbf16> to vector<16x240xbf16>
    %19 = tpu.concatenate %17, %18 in 1 : vector<16x16xbf16>, vector<16x240xbf16> -> vector<16x256xbf16>
    %c1 = arith.constant 1 : index
    %c0_11 = arith.constant 0 : index
    %20 = vector.load %arg2[%c1, %c0_11] : memref<8x256xbf16, #tpu.memory_space<vmem>>, vector<1x256xbf16>
    %21 = vector.broadcast %20 : vector<1x256xbf16> to vector<16x256xbf16>
    %22 = arith.mulf %19, %21 : vector<16x256xbf16>
    %c16 = arith.constant 16 : index
    %c0_12 = arith.constant 0 : index
    %23 = vector.load %arg10[%c16, %c0_12] : memref<144x256xbf16, #tpu.memory_space<vmem>>, vector<16x256xbf16>
    tpu.vector_store %arg10[%c16, %c0_12], %22 {strides = array<i32>} : memref<144x256xbf16, #tpu.memory_space<vmem>>, vector<16x256xbf16>,
    %24 = vector.extract_strided_slice %9 {offsets = [0, 241], sizes = [16, 15], strides = [1, 1]} : vector<16x256xbf16> to vector<16x15xbf16>
    %25 = vector.extract_strided_slice %9 {offsets = [0, 0], sizes = [16, 241], strides = [1, 1]} : vector<16x256xbf16> to vector<16x241xbf16>
    %26 = tpu.concatenate %24, %25 in 1 : vector<16x15xbf16>, vector<16x241xbf16> -> vector<16x256xbf16>
    %c2 = arith.constant 2 : index
    %c0_13 = arith.constant 0 : index
    %27 = vector.load %arg2[%c2, %c0_13] : memref<8x256xbf16, #tpu.memory_space<vmem>>, vector<1x256xbf16>
    %28 = vector.broadcast %27 : vector<1x256xbf16> to vector<16x256xbf16>
    %29 = arith.mulf %26, %28 : vector<16x256xbf16>
    %c32 = arith.constant 32 : index
    %c0_14 = arith.constant 0 : index
    %30 = vector.load %arg10[%c32, %c0_14] : memref<144x256xbf16, #tpu.memory_space<vmem>>, vector<16x256xbf16>
    tpu.vector_store %arg10[%c32, %c0_14], %29 {strides = array<i32>} : memref<144x256xbf16, #tpu.memory_space<vmem>>, vector<16x256xbf16>,
    %31 = vector.extract_strided_slice %9 {offsets = [0, 255], sizes = [16, 1], strides = [1, 1]} : vector<16x256xbf16> to vector<16x1xbf16>
    %32 = vector.extract_strided_slice %9 {offsets = [0, 0], sizes = [16, 255], strides = [1, 1]} : vector<16x256xbf16> to vector<16x255xbf16>
    %33 = tpu.concatenate %31, %32 in 1 : vector<16x1xbf16>, vector<16x255xbf16> -> vector<16x256xbf16>
    %c3 = arith.constant 3 : index
    %c0_15 = arith.constant 0 : index
    %34 = vector.load %arg2[%c3, %c0_15] : memref<8x256xbf16, #tpu.memory_space<vmem>>, vector<1x256xbf16>
    %35 = vector.broadcast %34 : vector<1x256xbf16> to vector<16x256xbf16>
    %36 = arith.mulf %33, %35 : vector<16x256xbf16>
    %c48 = arith.constant 48 : index
    %c0_16 = arith.constant 0 : index
    %37 = vector.load %arg10[%c48, %c0_16] : memref<144x256xbf16, #tpu.memory_space<vmem>>, vector<16x256xbf16>
    tpu.vector_store %arg10[%c48, %c0_16], %36 {strides = array<i32>} : memref<144x256xbf16, #tpu.memory_space<vmem>>, vector<16x256xbf16>,
    %c64 = arith.constant 64 : index
    %c0_17 = arith.constant 0 : index
    %38 = vector.load %arg10[%c64, %c0_17] : memref<144x256xbf16, #tpu.memory_space<vmem>>, vector<16x256xbf16>
    tpu.vector_store %arg10[%c64, %c0_17], %9 {strides = array<i32>} : memref<144x256xbf16, #tpu.memory_space<vmem>>, vector<16x256xbf16>,
    %39 = vector.extract_strided_slice %9 {offsets = [0, 1], sizes = [16, 255], strides = [1, 1]} : vector<16x256xbf16> to vector<16x255xbf16>
    %40 = vector.extract_strided_slice %9 {offsets = [0, 0], sizes = [16, 1], strides = [1, 1]} : vector<16x256xbf16> to vector<16x1xbf16>
    %41 = tpu.concatenate %39, %40 in 1 : vector<16x255xbf16>, vector<16x1xbf16> -> vector<16x256xbf16>
    %c4 = arith.constant 4 : index
    %c0_18 = arith.constant 0 : index
    %42 = vector.load %arg2[%c4, %c0_18] : memref<8x256xbf16, #tpu.memory_space<vmem>>, vector<1x256xbf16>
    %43 = vector.broadcast %42 : vector<1x256xbf16> to vector<16x256xbf16>
    %44 = arith.mulf %41, %43 : vector<16x256xbf16>
    %c80 = arith.constant 80 : index
    %c0_19 = arith.constant 0 : index
    %45 = vector.load %arg10[%c80, %c0_19] : memref<144x256xbf16, #tpu.memory_space<vmem>>, vector<16x256xbf16>
    tpu.vector_store %arg10[%c80, %c0_19], %44 {strides = array<i32>} : memref<144x256xbf16, #tpu.memory_space<vmem>>, vector<16x256xbf16>,
    %46 = vector.extract_strided_slice %9 {offsets = [0, 15], sizes = [16, 241], strides = [1, 1]} : vector<16x256xbf16> to vector<16x241xbf16>
    %47 = vector.extract_strided_slice %9 {offsets = [0, 0], sizes = [16, 15], strides = [1, 1]} : vector<16x256xbf16> to vector<16x15xbf16>
    %48 = tpu.concatenate %46, %47 in 1 : vector<16x241xbf16>, vector<16x15xbf16> -> vector<16x256xbf16>
    %c5 = arith.constant 5 : index
    %c0_20 = arith.constant 0 : index
    %49 = vector.load %arg2[%c5, %c0_20] : memref<8x256xbf16, #tpu.memory_space<vmem>>, vector<1x256xbf16>
    %50 = vector.broadcast %49 : vector<1x256xbf16> to vector<16x256xbf16>
    %51 = arith.mulf %48, %50 : vector<16x256xbf16>
    %c96 = arith.constant 96 : index
    %c0_21 = arith.constant 0 : index
    %52 = vector.load %arg10[%c96, %c0_21] : memref<144x256xbf16, #tpu.memory_space<vmem>>, vector<16x256xbf16>
    tpu.vector_store %arg10[%c96, %c0_21], %51 {strides = array<i32>} : memref<144x256xbf16, #tpu.memory_space<vmem>>, vector<16x256xbf16>,
    %53 = vector.extract_strided_slice %9 {offsets = [0, 16], sizes = [16, 240], strides = [1, 1]} : vector<16x256xbf16> to vector<16x240xbf16>
    %54 = vector.extract_strided_slice %9 {offsets = [0, 0], sizes = [16, 16], strides = [1, 1]} : vector<16x256xbf16> to vector<16x16xbf16>
    %55 = tpu.concatenate %53, %54 in 1 : vector<16x240xbf16>, vector<16x16xbf16> -> vector<16x256xbf16>
    %c6 = arith.constant 6 : index
    %c0_22 = arith.constant 0 : index
    %56 = vector.load %arg2[%c6, %c0_22] : memref<8x256xbf16, #tpu.memory_space<vmem>>, vector<1x256xbf16>
    %57 = vector.broadcast %56 : vector<1x256xbf16> to vector<16x256xbf16>
    %58 = arith.mulf %55, %57 : vector<16x256xbf16>
    %c112 = arith.constant 112 : index
    %c0_23 = arith.constant 0 : index
    %59 = vector.load %arg10[%c112, %c0_23] : memref<144x256xbf16, #tpu.memory_space<vmem>>, vector<16x256xbf16>
    tpu.vector_store %arg10[%c112, %c0_23], %58 {strides = array<i32>} : memref<144x256xbf16, #tpu.memory_space<vmem>>, vector<16x256xbf16>,
    %60 = vector.extract_strided_slice %9 {offsets = [0, 17], sizes = [16, 239], strides = [1, 1]} : vector<16x256xbf16> to vector<16x239xbf16>
    %61 = vector.extract_strided_slice %9 {offsets = [0, 0], sizes = [16, 17], strides = [1, 1]} : vector<16x256xbf16> to vector<16x17xbf16>
    %62 = tpu.concatenate %60, %61 in 1 : vector<16x239xbf16>, vector<16x17xbf16> -> vector<16x256xbf16>
    %c7 = arith.constant 7 : index
    %c0_24 = arith.constant 0 : index
    %63 = vector.load %arg2[%c7, %c0_24] : memref<8x256xbf16, #tpu.memory_space<vmem>>, vector<1x256xbf16>
    %64 = vector.broadcast %63 : vector<1x256xbf16> to vector<16x256xbf16>
    %65 = arith.mulf %62, %64 : vector<16x256xbf16>
    %c128 = arith.constant 128 : index
    %c0_25 = arith.constant 0 : index
    %66 = vector.load %arg10[%c128, %c0_25] : memref<144x256xbf16, #tpu.memory_space<vmem>>, vector<16x256xbf16>
    tpu.vector_store %arg10[%c128, %c0_25], %65 {strides = array<i32>} : memref<144x256xbf16, #tpu.memory_space<vmem>>, vector<16x256xbf16>,
    %c0_26 = arith.constant 0 : index
    %c0_27 = arith.constant 0 : index
    %67 = vector.load %arg5[%c0_26, %c0_27] : memref<16x144xbf16, #tpu.memory_space<vmem>>, vector<16x144xbf16>
    %c0_28 = arith.constant 0 : index
    %c0_29 = arith.constant 0 : index
    %68 = vector.load %arg10[%c0_28, %c0_29] : memref<144x256xbf16, #tpu.memory_space<vmem>>, vector<144x256xbf16>
    %cst_30 = arith.constant dense<0.000000e+00> : vector<16x256xf32>
    %69 = tpu.matmul %67, %68, %cst_30 {dimension_numbers = #tpu.dot_dimension_numbers<[1], [0], [0], [1], [0, 0, 1, 1], [], []>} : vector<16x144xbf16>, vector<144x256xbf16>, vector<16x256xf32> -> vector<16x256xf32>
    %c0_31 = arith.constant 0 : index
    %c0_32 = arith.constant 0 : index
    %70 = vector.load %arg6[%c0_31, %c0_32] : memref<16x1xf32, #tpu.memory_space<vmem>>, vector<16x1xf32>
    %71 = vector.broadcast %70 : vector<16x1xf32> to vector<16x256xf32>
    %72 = arith.addf %69, %71 : vector<16x256xf32>
    %cst_33 = arith.constant 0.000000e+00 : f32
    %73 = vector.broadcast %cst_33 : f32 to vector<16x256xf32>
    %74 = arith.maximumf %72, %73 : vector<16x256xf32>
    %c0_34 = arith.constant 0 : index
    %c0_35 = arith.constant 0 : index
    %75 = vector.load %arg7[%c0_34, %c0_35] : memref<64x16xbf16, #tpu.memory_space<vmem>>, vector<64x16xbf16>
    %76 = arith.truncf %74 : vector<16x256xf32> to vector<16x256xbf16>
    %cst_36 = arith.constant dense<0.000000e+00> : vector<64x256xf32>
    %77 = tpu.matmul %75, %76, %cst_36 {dimension_numbers = #tpu.dot_dimension_numbers<[1], [0], [0], [1], [0, 0, 1, 1], [], []>} : vector<64x16xbf16>, vector<16x256xbf16>, vector<64x256xf32> -> vector<64x256xf32>
    %c0_37 = arith.constant 0 : index
    %c0_38 = arith.constant 0 : index
    %78 = vector.load %arg8[%c0_37, %c0_38] : memref<64x1xf32, #tpu.memory_space<vmem>>, vector<64x1xf32>
    %79 = vector.broadcast %78 : vector<64x1xf32> to vector<64x256xf32>
    %80 = arith.addf %77, %79 : vector<64x256xf32>
    %81 = arith.extf %1 : vector<64x256xbf16> to vector<64x256xf32>
    %82 = arith.addf %80, %81 : vector<64x256xf32>
    %cst_39 = arith.constant 0.000000e+00 : f32
    %83 = vector.broadcast %cst_39 : f32 to vector<64x256xf32>
    %84 = arith.maximumf %82, %83 : vector<64x256xf32>
    %c0_40 = arith.constant 0 : index
    %c0_41 = arith.constant 0 : index
    %c0_42 = arith.constant 0 : index
    %85 = vector.load %arg9[%c0_40, %c0_41, %c0_42] : memref<1x64x256xf32, #tpu.memory_space<vmem>>, vector<1x64x256xf32>
    %86 = vector.shape_cast %85 : vector<1x64x256xf32> to vector<64x256xf32>
    %87 = vector.shape_cast %84 : vector<64x256xf32> to vector<1x64x256xf32>
    tpu.vector_store %arg9[%c0_40, %c0_41, %c0_42], %87 {strides = array<i32>} : memref<1x64x256xf32, #tpu.memory_space<vmem>>, vector<1x64x256xf32>,
    return
  }
  func.func @transform_0(%arg0: i32) -> (i32, i32, i32) {
    %c0_i32 = arith.constant 0 : i32
    %c0_i32_0 = arith.constant 0 : i32
    %c0_i32_1 = arith.constant 0 : i32
    return %arg0, %c0_i32, %c0_i32_0 : i32, i32, i32
  }
  func.func @transform_1(%arg0: i32) -> (i32, i32) {
    %c0_i32 = arith.constant 0 : i32
    %c0_i32_0 = arith.constant 0 : i32
    %c0_i32_1 = arith.constant 0 : i32
    return %c0_i32, %c0_i32_0 : i32, i32
  }
  func.func @transform_2(%arg0: i32) -> (i32, i32) {
    %c0_i32 = arith.constant 0 : i32
    %c0_i32_0 = arith.constant 0 : i32
    %c0_i32_1 = arith.constant 0 : i32
    return %c0_i32, %c0_i32_0 : i32, i32
  }
  func.func @transform_3(%arg0: i32) -> (i32, i32) {
    %c0_i32 = arith.constant 0 : i32
    %c0_i32_0 = arith.constant 0 : i32
    %c0_i32_1 = arith.constant 0 : i32
    return %c0_i32, %c0_i32_0 : i32, i32
  }
  func.func @transform_4(%arg0: i32) -> (i32, i32) {
    %c0_i32 = arith.constant 0 : i32
    %c0_i32_0 = arith.constant 0 : i32
    %c0_i32_1 = arith.constant 0 : i32
    return %c0_i32, %c0_i32_0 : i32, i32
  }
  func.func @transform_5(%arg0: i32) -> (i32, i32) {
    %c0_i32 = arith.constant 0 : i32
    %c0_i32_0 = arith.constant 0 : i32
    %c0_i32_1 = arith.constant 0 : i32
    return %c0_i32, %c0_i32_0 : i32, i32
  }
  func.func @transform_6(%arg0: i32) -> (i32, i32) {
    %c0_i32 = arith.constant 0 : i32
    %c0_i32_0 = arith.constant 0 : i32
    %c0_i32_1 = arith.constant 0 : i32
    return %c0_i32, %c0_i32_0 : i32, i32
  }
  func.func @transform_7(%arg0: i32) -> (i32, i32) {
    %c0_i32 = arith.constant 0 : i32
    %c0_i32_0 = arith.constant 0 : i32
    %c0_i32_1 = arith.constant 0 : i32
    return %c0_i32, %c0_i32_0 : i32, i32
  }
  func.func @transform_8(%arg0: i32) -> (i32, i32, i32) {
    %c0_i32 = arith.constant 0 : i32
    %c0_i32_0 = arith.constant 0 : i32
    %c0_i32_1 = arith.constant 0 : i32
    return %arg0, %c0_i32, %c0_i32_0 : i32, i32, i32
  }
}

</mosaic_0001>

<llo_original>
// kernel: bottleneck_forward.1
$region0: #{bottleneck_forward.1}
  #allocation0 [shape = 'u32[]', space=smem, size = 0x4, offset = 0x4, fixed_abs, tag = 'smem constant byte address 0x4 - core index']
  #allocation1 [shape = 'u32[144,128]{1,0:T(1,128)}', space=vmem, size = 0x12000, scoped, tag = 'internal scratch']
  #allocation2 [shape = 'bf16[144,256]{1,0:T(16,128)(2,1)}', space=vmem, size = 0x12000, scoped, tag = 'scratch operand']
  %s0 = inlined_call_operand.vmem [shape: bf16[2,64,256], index: 0, kind: input, shape index: {}]
  %s1 = inlined_call_operand.vmem [shape: bf16[8,256], index: 1, kind: input, shape index: {}]
  %s2 = inlined_call_operand.vmem [shape: bf16[16,64], index: 2, kind: input, shape index: {}]
  %s3 = inlined_call_operand.vmem [shape: f32[16,1], index: 3, kind: input, shape index: {}]
  %s4 = inlined_call_operand.vmem [shape: bf16[16,144], index: 4, kind: input, shape index: {}]
  %s5 = inlined_call_operand.vmem [shape: f32[16,1], index: 5, kind: input, shape index: {}]
  %s6 = inlined_call_operand.vmem [shape: bf16[64,16], index: 6, kind: input, shape index: {}]
  %s7 = inlined_call_operand.vmem [shape: f32[64,1], index: 7, kind: input, shape index: {}]
  %s8 = inlined_call_operand.vmem [shape: f32[2,64,256], index: 8, kind: output, shape index: {}]
  %s9 = sld [smem:[#allocation0]]
  $region65: #{bottleneck_forward.1} parent=0
    _
  %s11 = ssub.s32 1, %s9
  %s12 = scalar_select 0, %s11, %s9
  loop: start=0, step=1, limit=4
  $region2: #{bottleneck_forward.1} parent=0 // loop_pre_header
    _
  $region3: #{bottleneck_forward.1} parent=0 // loop_header
    %s14 = sphi 0, %s18
    %p15 = scmp.ge.s32.totalorder %s14, 4
    %s24 = sphi 0, %s26
    %s27 = sphi 0, %s24
    %s28 = sphi 0, %s27
    %s44 = sphi 0, %s28
    %s48 = sphi 0, %s48
    %s50 = sphi 0, %s48
    %s51 = sphi 0, %s50
    %s65 = sphi 0, %s51
    %s69 = sphi 0, %s69
    %s71 = sphi 0, %s69
    %s72 = sphi 0, %s71
    %s86 = sphi 0, %s72
    %s90 = sphi 0, %s90
    %s92 = sphi 0, %s90
    %s93 = sphi 0, %s92
    %s107 = sphi 0, %s93
    %s111 = sphi 0, %s111
    %s113 = sphi 0, %s111
    %s114 = sphi 0, %s113
    %s128 = sphi 0, %s114
    %s132 = sphi 0, %s132
    %s134 = sphi 0, %s132
    %s135 = sphi 0, %s134
    %s149 = sphi 0, %s135
    %s153 = sphi 0, %s153
    %s155 = sphi 0, %s153
    %s156 = sphi 0, %s155
    %s170 = sphi 0, %s156
    %s174 = sphi 0, %s174
    %s176 = sphi 0, %s174
    %s177 = sphi 0, %s176
    %s191 = sphi 0, %s177
    %s197 = sphi 0, %s199
    %s200 = sphi 0, %s197
    %s201 = sphi 0, %s200
    %s217 = sphi 0, %s201
  $region4: #{bottleneck_forward.1} parent=0 // loop_header_branch
    %17 = sbr.rel (%p15) target = $region8
  $region5: #{bottleneck_forward.1} parent=0 // loop_body
    %s19 = ssub.s32 %s14, 1
    %s20 = ssub.s32 %s14, 2
    %s21 = sadd.s32 %s14, 1
    %s22 = ssub.s32 %s14, %s21
    %p23 = scmp.eq.s32.totalorder %s22, 0
    %s25 = sadd.s32 %s24, 1
    %s26 = scalar_select %p23, %s24, %s25
    %p29 = pneg %p23
    %p30 = scmp.eq.s32.totalorder %s14, 1
    %p31 = por %p29, %p30
    %p32 = scmp.ne.s32.totalorder %s24, %s27
    %p33 = scmp.eq.s32.totalorder %s14, 0
    %p34 = por %p32, %p33
    %p35 = scmp.ne.s32.totalorder %s24, %s27
    %p36 = scmp.eq.s32.totalorder %s19, 1
    %p37 = por %p35, %p36
    %p38 = scmp.ne.s32.totalorder %s27, %s28
    %p39 = scmp.eq.s32.totalorder %s19, 0
    %p40 = por %p38, %p39
    %p41 = scmp.ne.s32.totalorder %s27, %s28
    %p42 = scmp.eq.s32.totalorder %s20, 1
    %p43 = por %p41, %p42
    %p45 = scmp.ne.s32.totalorder %s28, %s44
    %p46 = scmp.eq.s32.totalorder %s20, 0
    %p47 = por %p45, %p46
    %s49 = sadd.s32 %s48, 1
    %p52 = scmp.eq.s32.totalorder %s14, 1
    %p53 = scmp.ne.s32.totalorder %s48, %s50
    %p54 = scmp.eq.s32.totalorder %s14, 0
    %p55 = por %p53, %p54
    %p56 = scmp.ne.s32.totalorder %s48, %s50
    %p57 = scmp.eq.s32.totalorder %s19, 1
    %p58 = por %p56, %p57
    %p59 = scmp.ne.s32.totalorder %s50, %s51
    %p60 = scmp.eq.s32.totalorder %s19, 0
    %p61 = por %p59, %p60
    %p62 = scmp.ne.s32.totalorder %s50, %s51
    %p63 = scmp.eq.s32.totalorder %s20, 1
    %p64 = por %p62, %p63
    %p66 = scmp.ne.s32.totalorder %s51, %s65
    %p67 = scmp.eq.s32.totalorder %s20, 0
    %p68 = por %p66, %p67
    %s70 = sadd.s32 %s69, 1
    %p73 = scmp.eq.s32.totalorder %s14, 1
    %p74 = scmp.ne.s32.totalorder %s69, %s71
    %p75 = scmp.eq.s32.totalorder %s14, 0
    %p76 = por %p74, %p75
    %p77 = scmp.ne.s32.totalorder %s69, %s71
    %p78 = scmp.eq.s32.totalorder %s19, 1
    %p79 = por %p77, %p78
    %p80 = scmp.ne.s32.totalorder %s71, %s72
    %p81 = scmp.eq.s32.totalorder %s19, 0
    %p82 = por %p80, %p81
    %p83 = scmp.ne.s32.totalorder %s71, %s72
    %p84 = scmp.eq.s32.totalorder %s20, 1
    %p85 = por %p83, %p84
    %p87 = scmp.ne.s32.totalorder %s72, %s86
    %p88 = scmp.eq.s32.totalorder %s20, 0
    %p89 = por %p87, %p88
    %s91 = sadd.s32 %s90, 1
    %p94 = scmp.eq.s32.totalorder %s14, 1
    %p95 = scmp.ne.s32.totalorder %s90, %s92
    %p96 = scmp.eq.s32.totalorder %s14, 0
    %p97 = por %p95, %p96
    %p98 = scmp.ne.s32.totalorder %s90, %s92
    %p99 = scmp.eq.s32.totalorder %s19, 1
    %p100 = por %p98, %p99
    %p101 = scmp.ne.s32.totalorder %s92, %s93
    %p102 = scmp.eq.s32.totalorder %s19, 0
    %p103 = por %p101, %p102
    %p104 = scmp.ne.s32.totalorder %s92, %s93
    %p105 = scmp.eq.s32.totalorder %s20, 1
    %p106 = por %p104, %p105
    %p108 = scmp.ne.s32.totalorder %s93, %s107
    %p109 = scmp.eq.s32.totalorder %s20, 0
    %p110 = por %p108, %p109
    %s112 = sadd.s32 %s111, 1
    %p115 = scmp.eq.s32.totalorder %s14, 1
    %p116 = scmp.ne.s32.totalorder %s111, %s113
    %p117 = scmp.eq.s32.totalorder %s14, 0
    %p118 = por %p116, %p117
    %p119 = scmp.ne.s32.totalorder %s111, %s113
    %p120 = scmp.eq.s32.totalorder %s19, 1
    %p121 = por %p119, %p120
    %p122 = scmp.ne.s32.totalorder %s113, %s114
    %p123 = scmp.eq.s32.totalorder %s19, 0
    %p124 = por %p122, %p123
    %p125 = scmp.ne.s32.totalorder %s113, %s114
    %p126 = scmp.eq.s32.totalorder %s20, 1
    %p127 = por %p125, %p126
    %p129 = scmp.ne.s32.totalorder %s114, %s128
    %p130 = scmp.eq.s32.totalorder %s20, 0
    %p131 = por %p129, %p130
    %s133 = sadd.s32 %s132, 1
    %p136 = scmp.eq.s32.totalorder %s14, 1
    %p137 = scmp.ne.s32.totalorder %s132, %s134
    %p138 = scmp.eq.s32.totalorder %s14, 0
    %p139 = por %p137, %p138
    %p140 = scmp.ne.s32.totalorder %s132, %s134
    %p141 = scmp.eq.s32.totalorder %s19, 1
    %p142 = por %p140, %p141
    %p143 = scmp.ne.s32.totalorder %s134, %s135
    %p144 = scmp.eq.s32.totalorder %s19, 0
    %p145 = por %p143, %p144
    %p146 = scmp.ne.s32.totalorder %s134, %s135
    %p147 = scmp.eq.s32.totalorder %s20, 1
    %p148 = por %p146, %p147
    %p150 = scmp.ne.s32.totalorder %s135, %s149
    %p151 = scmp.eq.s32.totalorder %s20, 0
    %p152 = por %p150, %p151
    %s154 = sadd.s32 %s153, 1
    %p157 = scmp.eq.s32.totalorder %s14, 1
    %p158 = scmp.ne.s32.totalorder %s153, %s155
    %p159 = scmp.eq.s32.totalorder %s14, 0
    %p160 = por %p158, %p159
    %p161 = scmp.ne.s32.totalorder %s153, %s155
    %p162 = scmp.eq.s32.totalorder %s19, 1
    %p163 = por %p161, %p162
    %p164 = scmp.ne.s32.totalorder %s155, %s156
    %p165 = scmp.eq.s32.totalorder %s19, 0
    %p166 = por %p164, %p165
    %p167 = scmp.ne.s32.totalorder %s155, %s156
    %p168 = scmp.eq.s32.totalorder %s20, 1
    %p169 = por %p167, %p168
    %p171 = scmp.ne.s32.totalorder %s156, %s170
    %p172 = scmp.eq.s32.totalorder %s20, 0
    %p173 = por %p171, %p172
    %s175 = sadd.s32 %s174, 1
    %p178 = scmp.eq.s32.totalorder %s14, 1
    %p179 = scmp.ne.s32.totalorder %s174, %s176
    %p180 = scmp.eq.s32.totalorder %s14, 0
    %p181 = por %p179, %p180
    %p182 = scmp.ne.s32.totalorder %s174, %s176
    %p183 = scmp.eq.s32.totalorder %s19, 1
    %p184 = por %p182, %p183
    %p185 = scmp.ne.s32.totalorder %s176, %s177
    %p186 = scmp.eq.s32.totalorder %s19, 0
    %p187 = por %p185, %p186
    %p188 = scmp.ne.s32.totalorder %s176, %s177
    %p189 = scmp.eq.s32.totalorder %s20, 1
    %p190 = por %p188, %p189
    %p192 = scmp.ne.s32.totalorder %s177, %s191
    %p193 = scmp.eq.s32.totalorder %s20, 0
    %p194 = por %p192, %p193
    %s195 = ssub.s32 %s14, %s21
    %p196 = scmp.eq.s32.totalorder %s195, 0
    %s198 = sadd.s32 %s197, 1
    %s199 = scalar_select %p196, %s197, %s198
    %p202 = pneg %p196
    %p203 = scmp.eq.s32.totalorder %s14, 1
    %p204 = por %p202, %p203
    %p205 = scmp.ne.s32.totalorder %s197, %s200
    %p206 = scmp.eq.s32.totalorder %s14, 0
    %p207 = por %p205, %p206
    %p208 = scmp.ne.s32.totalorder %s197, %s200
    %p209 = scmp.eq.s32.totalorder %s19, 1
    %p210 = por %p208, %p209
    %p211 = scmp.ne.s32.totalorder %s200, %s201
    %p212 = scmp.eq.s32.totalorder %s19, 0
    %p213 = por %p211, %p212
    %p214 = scmp.ne.s32.totalorder %s200, %s201
    %p215 = scmp.eq.s32.totalorder %s20, 1
    %p216 = por %p214, %p215
    %p218 = scmp.ne.s32.totalorder %s201, %s217
    %p219 = scmp.eq.s32.totalorder %s20, 0
    %p220 = por %p218, %p219
    %p221 = scmp.le.s32.totalorder 1, %s14
    %p222 = scmp.lt.s32.totalorder %s14, 3
    %p223 = pnand %p221, %p222
    %p224 = pneg %p223
    // Predicated region
    $region9: #{bottleneck_forward.1} parent=5 // pred_check
      _
    $region10: #{bottleneck_forward.1} parent=5 // pred_check_branch
      %226 = sbr.rel (%p223) target = $region12
    $region11: #{bottleneck_forward.1} parent=5 // pred_region
      %s227 = ssub.s32 %s14, 1
      // Predicated region
      $region13: #{bottleneck_forward.1} parent=11 // pred_check
        %p228 = pneg %p61
      $region14: #{bottleneck_forward.1} parent=11 // pred_check_branch
        %230 = sbr.rel (%p228) target = $region16
      $region15: #{bottleneck_forward.1} parent=11 // pred_region
        _
      $region16: #{bottleneck_forward.1} parent=11 // pred_fallthru
        _
      // Predicated region
      $region17: #{bottleneck_forward.1} parent=11 // pred_check
        %p231 = pneg %p82
      $region18: #{bottleneck_forward.1} parent=11 // pred_check_branch
        %233 = sbr.rel (%p231) target = $region20
      $region19: #{bottleneck_forward.1} parent=11 // pred_region
        _
      $region20: #{bottleneck_forward.1} parent=11 // pred_fallthru
        _
      // Predicated region
      $region21: #{bottleneck_forward.1} parent=11 // pred_check
        %p234 = pneg %p103
      $region22: #{bottleneck_forward.1} parent=11 // pred_check_branch
        %236 = sbr.rel (%p234) target = $region24
      $region23: #{bottleneck_forward.1} parent=11 // pred_region
        _
      $region24: #{bottleneck_forward.1} parent=11 // pred_fallthru
        _
      // Predicated region
      $region25: #{bottleneck_forward.1} parent=11 // pred_check
        %p237 = pneg %p124
      $region26: #{bottleneck_forward.1} parent=11 // pred_check_branch
        %239 = sbr.rel (%p237) target = $region28
      $region27: #{bottleneck_forward.1} parent=11 // pred_region
        _
      $region28: #{bottleneck_forward.1} parent=11 // pred_fallthru
        _
      // Predicated region
      $region29: #{bottleneck_forward.1} parent=11 // pred_check
        %p240 = pneg %p145
      $region30: #{bottleneck_forward.1} parent=11 // pred_check_branch
        %242 = sbr.rel (%p240) target = $region32
      $region31: #{bottleneck_forward.1} parent=11 // pred_region
        _
      $region32: #{bottleneck_forward.1} parent=11 // pred_fallthru
        _
      // Predicated region
      $region33: #{bottleneck_forward.1} parent=11 // pred_check
        %p243 = pneg %p166
      $region34: #{bottleneck_forward.1} parent=11 // pred_check_branch
        %245 = sbr.rel (%p243) target = $region36
      $region35: #{bottleneck_forward.1} parent=11 // pred_region
        _
      $region36: #{bottleneck_forward.1} parent=11 // pred_fallthru
        _
      // Predicated region
      $region37: #{bottleneck_forward.1} parent=11 // pred_check
        %p246 = pneg %p187
      $region38: #{bottleneck_forward.1} parent=11 // pred_check_branch
        %248 = sbr.rel (%p246) target = $region40
      $region39: #{bottleneck_forward.1} parent=11 // pred_region
        _
      $region40: #{bottleneck_forward.1} parent=11 // pred_fallthru
        _
    $region12: #{bottleneck_forward.1} parent=5 // pred_fallthru
      _
    %p249 = scmp.lt.s32.totalorder %s14, 2
    // Predicated region
    $region41: #{bottleneck_forward.1} parent=5 // pred_check
      %p250 = pneg %p249
    $region42: #{bottleneck_forward.1} parent=5 // pred_check_branch
      %252 = sbr.rel (%p250) target = $region44
    $region43: #{bottleneck_forward.1} parent=5 // pred_region
      // Predicated region
      $region45: #{bottleneck_forward.1} parent=43 // pred_check
        %p253 = pneg %p34
      $region46: #{bottleneck_forward.1} parent=43 // pred_check_branch
        %255 = sbr.rel (%p253) target = $region48
      $region47: #{bottleneck_forward.1} parent=43 // pred_region
        %p256 = scmp.lt.s32.totalorder %s14, 1
        %s257 = scalar_select %p256, %s14, 1
        %s258 = smul.addr %s257, 16
        %s259 = smul.addr %s258, 4
        %s260 = scalar_lea.vmem %s0, %s259
      $region48: #{bottleneck_forward.1} parent=43 // pred_fallthru
        _
    $region44: #{bottleneck_forward.1} parent=5 // pred_fallthru
      _
    %p261 = scmp.le.s32.totalorder 1, %s14
    %p262 = scmp.lt.s32.totalorder %s14, 3
    %p263 = pnand %p261, %p262
    %p264 = pneg %p263
    // Predicated region
    $region49: #{bottleneck_forward.1} parent=5 // pred_check
      _
    $region50: #{bottleneck_forward.1} parent=5 // pred_check_branch
      %266 = sbr.rel (%p263) target = $region52
    $region51: #{bottleneck_forward.1} parent=5 // pred_region
      %s267 = ssub.s32 %s14, 1
      %p268 = scmp.lt.s32.totalorder %s19, 1
      %s269 = scalar_select %p268, %s19, 1
      %s270 = smul.addr %s269, 16
      %s271 = smul.addr %s270, 4
      %s272 = scalar_lea.vmem %s0, %s271
      %p273 = pneg %p40
      %p274 = pneg %p37
      %p275 = pneg %p61
      %p276 = pneg %p58
      %p277 = pneg %p82
      %p278 = pneg %p79
      %p279 = pneg %p103
      %p280 = pneg %p100
      %p281 = pneg %p124
      %p282 = pneg %p121
      %p283 = pneg %p145
      %p284 = pneg %p142
      %p285 = pneg %p166
      %p286 = pneg %p163
      %p287 = pneg %p187
      %p288 = pneg %p184
      %p289 = pneg %p213
      %p290 = pneg %p210
      %p291 = scmp.lt.s32.totalorder %s19, 1
      %s292 = scalar_select %p291, %s19, 1
      %s293 = smul.addr %s292, 16
      %s294 = smul.addr %s293, 8
      %s295 = scalar_lea.vmem %s8, %s294
      %p296 = scmp.lt.s32.totalorder %s19, 1
      %s297 = scalar_select %p296, %s19, 1
      %s298 = smul.addr %s297, 16
      %s299 = smul.addr %s298, 4
      %s300 = scalar_lea.vmem %s0, %s299
      %p301 = scmp.lt.s32.totalorder %s19, 1
      %s302 = scalar_select %p301, %s19, 1
      %s303 = smul.addr %s302, 16
      %s304 = smul.addr %s303, 8
      %s305 = scalar_lea.vmem %s8, %s304
      %v307 = vld [vmem:[%s300] sm:$0xff]
      %v308 = vld [vmem:[%s300 + $0x8] sm:$0xff]
      %v309 = vld [vmem:[%s300 + $0x10] sm:$0xff]
      %v310 = vld [vmem:[%s300 + $0x18] sm:$0xff]
      %v311 = vld [vmem:[%s300 + $0x20] sm:$0xff]
      %v312 = vld [vmem:[%s300 + $0x28] sm:$0xff]
      %v313 = vld [vmem:[%s300 + $0x30] sm:$0xff]
      %v314 = vld [vmem:[%s300 + $0x38] sm:$0xff]
      %v315 = vld [vmem:[%s2] sm:$0xf]
      %v316 = vld [vmem:[%s2 + $0x4] sm:$0xf]
      %v317 = vld [vmem:[%s3] sm:$0xff]
      %v318 = vld [vmem:[%s3 + $0x8] sm:$0xff]
      %320 = vset.pattern.permute.xlu0 0
      %321 = vperm.xlu0 %320, %v317
      %v322 = vpop.permute.xlu0 %321
      %325 = vset.pattern.permute.xlu0 0
      %326 = vperm.xlu0 %325, %v318
      %v327 = vpop.permute.xlu0 %326
      %v331 = vunpack.c.l.b16 %v315
      %v332 = vunpack.c.l.b16 %v316
      %v333 = vpack.c.b16 %v332, %v331
      %v342 = vunpack.c.l.b16 %v307
      %v343 = vunpack.c.h.b16 %v307
      %v344 = vunpack.c.l.b16 %v308
      %v345 = vunpack.c.h.b16 %v308
      %v346 = vunpack.c.l.b16 %v309
      %v347 = vunpack.c.h.b16 %v309
      %v348 = vunpack.c.l.b16 %v310
      %v349 = vunpack.c.h.b16 %v310
      %v350 = vunpack.c.l.b16 %v311
      %v351 = vunpack.c.h.b16 %v311
      %v352 = vunpack.c.l.b16 %v312
      %v353 = vunpack.c.h.b16 %v312
      %v354 = vunpack.c.l.b16 %v313
      %v355 = vunpack.c.h.b16 %v313
      %v356 = vunpack.c.l.b16 %v314
      %v357 = vunpack.c.h.b16 %v314
      %v358 = vpack.c.b16 %v344, %v342
      %v359 = vpack.c.b16 %v345, %v343
      %v360 = vpack.c.b16 %v348, %v346
      %v361 = vpack.c.b16 %v349, %v347
      %v362 = vpack.c.b16 %v352, %v350
      %v363 = vpack.c.b16 %v353, %v351
      %v364 = vpack.c.b16 %v356, %v354
      %v365 = vpack.c.b16 %v357, %v355
      %vm374 = vcmask 523264
      %v376 = vsel %vm374, %v333, 0
      %378 = vmatprep.subr.bf16.mxu0 %v359
      %379 = vmatpush1.bf16.msra.mxu0 %v358
      %380 = vmatprep.subr.bf16.mxu0 %v361
      %381 = vmatpush1.bf16.msra.mxu0 %v360
      %382 = vmatprep.subr.bf16.mxu0 %v363
      %383 = vmatpush1.bf16.msra.mxu0 %v362
      %384 = vmatprep.subr.bf16.mxu0 %v365
      %385 = vmatpush1.bf16.msra.mxu0 %v364
      %386 = vmatprep.subr.bf16.mxu0 0
      %387 = vmatpush1.bf16.msra.mxu0 0
      %388 = vmatprep.subr.bf16.mxu0 0
      %389 = vmatpush1.bf16.msra.mxu0 0
      %390 = vmatprep.subr.bf16.mxu0 0
      %391 = vmatpush1.bf16.msra.mxu0 0
      %392 = vmatprep.subr.bf16.mxu0 0
      %393 = vmatpush1.bf16.msra.mxu0 0
      %394 = vmatprep.subr.bf16.mxu0 0
      %395 = vmatpush1.bf16.msra.mxu0 0
      %396 = vmatprep.subr.bf16.mxu0 0
      %397 = vmatpush1.bf16.msra.mxu0 0
      %398 = vmatprep.subr.bf16.mxu0 0
      %399 = vmatpush1.bf16.msra.mxu0 0
      %400 = vmatprep.subr.bf16.mxu0 0
      %401 = vmatpush1.bf16.msra.mxu0 0
      %402 = vmatprep.subr.bf16.mxu0 0
      %403 = vmatpush1.bf16.msra.mxu0 0
      %404 = vmatprep.subr.bf16.mxu0 0
      %405 = vmatpush1.bf16.msra.mxu0 0
      %406 = vmatprep.subr.bf16.mxu0 0
      %407 = vmatpush1.bf16.msra.mxu0 0
      %408 = vmatprep.subr.bf16.mxu0 0
      %409 = vmatpush1.bf16.msra.mxu0 0
      %410 = vmatprep.mubr.bf16.mxu0 0
      %411 = vmatmul.mubr.bf16.gmra.mrb[0].mxu0 %v376
      %v412 = vpop.f32.mrb[0].mxu0
      %v413 = vadd.f32 %v322, %v412
      %v414 = vpop.f32.mrb[0].mxu0
      %v415 = vadd.f32 %v322, %v414
      %v416 = vpop.f32.mrb[0].mxu0
      %v417 = vadd.f32 %v327, %v416
      %v418 = vpop.f32.mrb[0].mxu0
      %v419 = vadd.f32 %v327, %v418
      %420 = vdwg.mxu0
      %v421 = vmax.f32 %v413, 0.0
      %v422 = vmax.f32 %v415, 0.0
      %v423 = vmax.f32 %v417, 0.0
      %v424 = vmax.f32 %v419, 0.0
      %v425 = vpack.c.bf16 %v423, %v421
      %v426 = vpack.c.bf16 %v424, %v422
      %428 = vrot.lane.b32.xlu0 %v426, 17
      %v429 = vpop.permute.xlu0 %428
      %431 = vrot.lane.b32.xlu0 %v425, 17
      %v432 = vpop.permute.xlu0 %431
      %vm433 = vcmask 138240
      %v434 = vsel %vm433, %v432, %v429
      %vm436 = vcmask 138240
      %v439 = vsel %vm436, %v429, %v432
      %v441 = vld [vmem:[%s1] sm:$0x11]
      %v443 = vunpack.c.l.b16 %v441
      %v444 = vunpack.c.h.b16 %v441
      %v445 = vpack.c.b16 %v443, %v443
      %v446 = vpack.c.b16 %v444, %v444
      %v448 = vpack.i.b16 %v445, %v445
      %v450 = vlaneseq
      %v451 = vshrl.u32 %v450, 7
      %v452 = vsub.s32 0, %v451
      %v453 = vrot.slane %v448, %v452
      %v455 = vpack.i.b16 %v446, %v446
      %v457 = vlaneseq
      %v458 = vshrl.u32 %v457, 7
      %v459 = vsub.s32 0, %v458
      %v460 = vrot.slane %v455, %v459
      %v461 = vmul.bf16 %v439, %v453
      %v462 = vmul.bf16 %v434, %v460
      %463 = vst [vmem:[#allocation2] sm:$0xff] %v461
      %464 = vst [vmem:[#allocation2 + $0x8] sm:$0xff] %v462
      %465 = vrot.lane.b32.xlu0 %v426, 16
      %v466 = vpop.permute.xlu0 %465
      %467 = vrot.lane.b32.xlu0 %v425, 16
      %v468 = vpop.permute.xlu0 %467
      %vm469 = vcmask 130048
      %v470 = vsel %vm469, %v468, %v466
      %vm472 = vcmask 130048
      %v475 = vsel %vm472, %v466, %v468
      %v477 = vld [vmem:[%s1] sm:$0x11]
      %v479 = vunpack.c.l.b16 %v477
      %v480 = vunpack.c.h.b16 %v477
      %v481 = vpack.c.b16 %v479, %v479
      %v482 = vpack.c.b16 %v480, %v480
      %v484 = vshrl.u32 %v481, 16
      %v485 = vpack.i.b16 %v484, %v484
      %v487 = vlaneseq
      %v488 = vshrl.u32 %v487, 7
      %v489 = vsub.s32 0, %v488
      %v490 = vrot.slane %v485, %v489
      %v492 = vshrl.u32 %v482, 16
      %v493 = vpack.i.b16 %v492, %v492
      %v495 = vlaneseq
      %v496 = vshrl.u32 %v495, 7
      %v497 = vsub.s32 0, %v496
      %v498 = vrot.slane %v493, %v497
      %v499 = vmul.bf16 %v475, %v490
      %v500 = vmul.bf16 %v470, %v498
      %501 = vst [vmem:[#allocation2 + $0x10] sm:$0xff] %v499
      %502 = vst [vmem:[#allocation2 + $0x18] sm:$0xff] %v500
      %503 = vrot.lane.b32.xlu0 %v426, 15
      %v504 = vpop.permute.xlu0 %503
      %505 = vrot.lane.b32.xlu0 %v425, 15
      %v506 = vpop.permute.xlu0 %505
      %vm507 = vcmask 121856
      %v508 = vsel %vm507, %v506, %v504
      %vm510 = vcmask 121856
      %v513 = vsel %vm510, %v504, %v506
      %v515 = vld [vmem:[%s1] sm:$0x22]
      %v517 = vunpack.c.l.b16 %v515
      %v518 = vunpack.c.h.b16 %v515
      %v519 = vpack.c.b16 %v517, %v517
      %v520 = vpack.c.b16 %v518, %v518
      %v522 = vpack.i.b16 %v519, %v519
      %v524 = vlaneseq
      %v525 = vshrl.u32 %v524, 7
      %v526 = vsub.s32 1, %v525
      %v527 = vrot.slane %v522, %v526
      %v529 = vpack.i.b16 %v520, %v520
      %v531 = vlaneseq
      %v532 = vshrl.u32 %v531, 7
      %v533 = vsub.s32 1, %v532
      %v534 = vrot.slane %v529, %v533
      %v535 = vmul.bf16 %v513, %v527
      %v536 = vmul.bf16 %v508, %v534
      %537 = vst [vmem:[#allocation2 + $0x20] sm:$0xff] %v535
      %538 = vst [vmem:[#allocation2 + $0x28] sm:$0xff] %v536
      %539 = vrot.lane.b32.xlu0 %v426, 1
      %v540 = vpop.permute.xlu0 %539
      %541 = vrot.lane.b32.xlu0 %v425, 1
      %v542 = vpop.permute.xlu0 %541
      %vm543 = vcmask 7168
      %v544 = vsel %vm543, %v542, %v540
      %vm546 = vcmask 7168
      %v549 = vsel %vm546, %v540, %v542
      %v551 = vld [vmem:[%s1] sm:$0x22]
      %v553 = vunpack.c.l.b16 %v551
      %v554 = vunpack.c.h.b16 %v551
      %v555 = vpack.c.b16 %v553, %v553
      %v556 = vpack.c.b16 %v554, %v554
      %v558 = vshrl.u32 %v555, 16
      %v559 = vpack.i.b16 %v558, %v558
      %v561 = vlaneseq
      %v562 = vshrl.u32 %v561, 7
      %v563 = vsub.s32 1, %v562
      %v564 = vrot.slane %v559, %v563
      %v566 = vshrl.u32 %v556, 16
      %v567 = vpack.i.b16 %v566, %v566
      %v569 = vlaneseq
      %v570 = vshrl.u32 %v569, 7
      %v571 = vsub.s32 1, %v570
      %v572 = vrot.slane %v567, %v571
      %v573 = vmul.bf16 %v549, %v564
      %v574 = vmul.bf16 %v544, %v572
      %575 = vst [vmem:[#allocation2 + $0x30] sm:$0xff] %v573
      %576 = vst [vmem:[#allocation2 + $0x38] sm:$0xff] %v574
      %577 = vst [vmem:[#allocation2 + $0x40] sm:$0xff] %v425
      %578 = vst [vmem:[#allocation2 + $0x48] sm:$0xff] %v426
      %579 = vrot.lane.b32.xlu0 %v425, 127
      %v580 = vpop.permute.xlu0 %579
      %581 = vrot.lane.b32.xlu0 %v426, 127
      %v582 = vpop.permute.xlu0 %581
      %vm583 = vcmask 1039360
      %v584 = vsel %vm583, %v580, %v582
      %vm586 = vcmask 1039360
      %v589 = vsel %vm586, %v582, %v580
      %v591 = vld [vmem:[%s1] sm:$0x44]
      %v593 = vunpack.c.l.b16 %v591
      %v594 = vunpack.c.h.b16 %v591
      %v595 = vpack.c.b16 %v593, %v593
      %v596 = vpack.c.b16 %v594, %v594
      %v598 = vpack.i.b16 %v595, %v595
      %v600 = vlaneseq
      %v601 = vshrl.u32 %v600, 7
      %v602 = vsub.s32 2, %v601
      %v603 = vrot.slane %v598, %v602
      %v605 = vpack.i.b16 %v596, %v596
      %v607 = vlaneseq
      %v608 = vshrl.u32 %v607, 7
      %v609 = vsub.s32 2, %v608
      %v610 = vrot.slane %v605, %v609
      %v611 = vmul.bf16 %v584, %v603
      %v612 = vmul.bf16 %v589, %v610
      %613 = vst [vmem:[#allocation2 + $0x50] sm:$0xff] %v611
      %614 = vst [vmem:[#allocation2 + $0x58] sm:$0xff] %v612
      %615 = vrot.lane.b32.xlu0 %v425, 113
      %v616 = vpop.permute.xlu0 %615
      %617 = vrot.lane.b32.xlu0 %v426, 113
      %v618 = vpop.permute.xlu0 %617
      %vm619 = vcmask 924672
      %v620 = vsel %vm619, %v616, %v618
      %vm622 = vcmask 924672
      %v625 = vsel %vm622, %v618, %v616
      %v627 = vld [vmem:[%s1] sm:$0x44]
      %v629 = vunpack.c.l.b16 %v627
      %v630 = vunpack.c.h.b16 %v627
      %v631 = vpack.c.b16 %v629, %v629
      %v632 = vpack.c.b16 %v630, %v630
      %v634 = vshrl.u32 %v631, 16
      %v635 = vpack.i.b16 %v634, %v634
      %v637 = vlaneseq
      %v638 = vshrl.u32 %v637, 7
      %v639 = vsub.s32 2, %v638
      %v640 = vrot.slane %v635, %v639
      %v642 = vshrl.u32 %v632, 16
      %v643 = vpack.i.b16 %v642, %v642
      %v645 = vlaneseq
      %v646 = vshrl.u32 %v645, 7
      %v647 = vsub.s32 2, %v646
      %v648 = vrot.slane %v643, %v647
      %v649 = vmul.bf16 %v620, %v640
      %v650 = vmul.bf16 %v625, %v648
      %651 = vst [vmem:[#allocation2 + $0x60] sm:$0xff] %v649
      %652 = vst [vmem:[#allocation2 + $0x68] sm:$0xff] %v650
      %653 = vrot.lane.b32.xlu0 %v425, 112
      %v654 = vpop.permute.xlu0 %653
      %655 = vrot.lane.b32.xlu0 %v426, 112
      %v656 = vpop.permute.xlu0 %655
      %vm657 = vcmask 916480
      %v658 = vsel %vm657, %v654, %v656
      %vm660 = vcmask 916480
      %v663 = vsel %vm660, %v656, %v654
      %v665 = vld [vmem:[%s1] sm:$0x88]
      %v667 = vunpack.c.l.b16 %v665
      %v668 = vunpack.c.h.b16 %v665
      %v669 = vpack.c.b16 %v667, %v667
      %v670 = vpack.c.b16 %v668, %v668
      %v672 = vpack.i.b16 %v669, %v669
      %v674 = vlaneseq
      %v675 = vshrl.u32 %v674, 7
      %v676 = vsub.s32 3, %v675
      %v677 = vrot.slane %v672, %v676
      %v679 = vpack.i.b16 %v670, %v670
      %v681 = vlaneseq
      %v682 = vshrl.u32 %v681, 7
      %v683 = vsub.s32 3, %v682
      %v684 = vrot.slane %v679, %v683
      %v685 = vmul.bf16 %v658, %v677
      %v686 = vmul.bf16 %v663, %v684
      %687 = vst [vmem:[#allocation2 + $0x70] sm:$0xff] %v685
      %688 = vst [vmem:[#allocation2 + $0x78] sm:$0xff] %v686
      %689 = vrot.lane.b32.xlu0 %v425, 111
      %v690 = vpop.permute.xlu0 %689
      %691 = vrot.lane.b32.xlu0 %v426, 111
      %v692 = vpop.permute.xlu0 %691
      %vm693 = vcmask 908288
      %v694 = vsel %vm693, %v690, %v692
      %vm696 = vcmask 908288
      %v699 = vsel %vm696, %v692, %v690
      %v701 = vld [vmem:[%s1] sm:$0x88]
      %v703 = vunpack.c.l.b16 %v701
      %v704 = vunpack.c.h.b16 %v701
      %v705 = vpack.c.b16 %v703, %v703
      %v706 = vpack.c.b16 %v704, %v704
      %v708 = vshrl.u32 %v705, 16
      %v709 = vpack.i.b16 %v708, %v708
      %v711 = vlaneseq
      %v712 = vshrl.u32 %v711, 7
      %v713 = vsub.s32 3, %v712
      %v714 = vrot.slane %v709, %v713
      %v716 = vshrl.u32 %v706, 16
      %v717 = vpack.i.b16 %v716, %v716
      %v719 = vlaneseq
      %v720 = vshrl.u32 %v719, 7
      %v721 = vsub.s32 3, %v720
      %v722 = vrot.slane %v717, %v721
      %v723 = vmul.bf16 %v694, %v714
      %v724 = vmul.bf16 %v699, %v722
      %725 = vst [vmem:[#allocation2 + $0x80] sm:$0xff] %v723
      %726 = vst [vmem:[#allocation2 + $0x88] sm:$0xff] %v724
      %v727 = vld [vmem:[%s4] sm:$0xff]
      %v728 = vld [vmem:[%s4 + $0x8] sm:$0xff]
      %v729 = vld [vmem:[#allocation2] sm:$0xff]
      %v730 = vld [vmem:[#allocation2 + $0x8] sm:$0xff]
      %v731 = vld [vmem:[#allocation2 + $0x10] sm:$0xff]
      %v732 = vld [vmem:[#allocation2 + $0x18] sm:$0xff]
      %v733 = vld [vmem:[#allocation2 + $0x20] sm:$0xff]
      %v734 = vld [vmem:[#allocation2 + $0x28] sm:$0xff]
      %v735 = vld [vmem:[#allocation2 + $0x30] sm:$0xff]
      %v736 = vld [vmem:[#allocation2 + $0x38] sm:$0xff]
      %v737 = vld [vmem:[#allocation2 + $0x40] sm:$0xff]
      %v738 = vld [vmem:[#allocation2 + $0x48] sm:$0xff]
      %v739 = vld [vmem:[#allocation2 + $0x50] sm:$0xff]
      %v740 = vld [vmem:[#allocation2 + $0x58] sm:$0xff]
      %v741 = vld [vmem:[#allocation2 + $0x60] sm:$0xff]
      %v742 = vld [vmem:[#allocation2 + $0x68] sm:$0xff]
      %v743 = vld [vmem:[#allocation2 + $0x70] sm:$0xff]
      %v744 = vld [vmem:[#allocation2 + $0x78] sm:$0xff]
      %v745 = vld [vmem:[#allocation2 + $0x80] sm:$0xff]
      %v746 = vld [vmem:[#allocation2 + $0x88] sm:$0xff]
      %v747 = vld [vmem:[%s5] sm:$0xff]
      %v748 = vld [vmem:[%s5 + $0x8] sm:$0xff]
      %750 = vset.pattern.permute.xlu0 0
      %751 = vperm.xlu0 %750, %v747
      %v752 = vpop.permute.xlu0 %751
      %755 = vset.pattern.permute.xlu0 0
      %756 = vperm.xlu0 %755, %v748
      %v757 = vpop.permute.xlu0 %756
      %v761 = vunpack.c.l.b16 %v727
      %v762 = vunpack.c.h.b16 %v727
      %v763 = vunpack.c.l.b16 %v728
      %v764 = vunpack.c.h.b16 %v728
      %v765 = vpack.c.b16 %v763, %v761
      %v766 = vpack.c.b16 %v764, %v762
      %v769 = vsel %vm472, %v766, 0
      %771 = vmatprep.subr.bf16.mxu0 %v730
      %772 = vmatpush1.bf16.msra.mxu0 %v729
      %773 = vmatprep.subr.bf16.mxu0 %v732
      %774 = vmatpush1.bf16.msra.mxu0 %v731
      %775 = vmatprep.subr.bf16.mxu0 %v734
      %776 = vmatpush1.bf16.msra.mxu0 %v733
      %777 = vmatprep.subr.bf16.mxu0 %v736
      %778 = vmatpush1.bf16.msra.mxu0 %v735
      %779 = vmatprep.subr.bf16.mxu0 %v738
      %780 = vmatpush1.bf16.msra.mxu0 %v737
      %781 = vmatprep.subr.bf16.mxu0 %v740
      %782 = vmatpush1.bf16.msra.mxu0 %v739
      %783 = vmatprep.subr.bf16.mxu0 %v742
      %784 = vmatpush1.bf16.msra.mxu0 %v741
      %785 = vmatprep.subr.bf16.mxu0 %v744
      %786 = vmatpush1.bf16.msra.mxu0 %v743
      %787 = vmatprep.subr.bf16.mxu0 %v746
      %788 = vmatpush1.bf16.msra.mxu0 %v745
      %789 = vmatprep.subr.bf16.mxu0 0
      %790 = vmatpush1.bf16.msra.mxu0 0
      %791 = vmatprep.subr.bf16.mxu0 0
      %792 = vmatpush1.bf16.msra.mxu0 0
      %793 = vmatprep.subr.bf16.mxu0 0
      %794 = vmatpush1.bf16.msra.mxu0 0
      %795 = vmatprep.subr.bf16.mxu0 0
      %796 = vmatpush1.bf16.msra.mxu0 0
      %797 = vmatprep.subr.bf16.mxu0 0
      %798 = vmatpush1.bf16.msra.mxu0 0
      %799 = vmatprep.subr.bf16.mxu0 0
      %800 = vmatpush1.bf16.msra.mxu0 0
      %801 = vmatprep.subr.bf16.mxu0 0
      %802 = vmatpush1.bf16.msra.mxu0 0
      %803 = vmatprep.mubr.bf16.mxu0 %v769
      %804 = vmatmul.mubr.bf16.gmra.mrb[0].mxu0 %v765
      %v805 = vpop.f32.mrb[0].mxu0
      %v806 = vadd.f32 %v752, %v805
      %v807 = vpop.f32.mrb[0].mxu0
      %v808 = vadd.f32 %v752, %v807
      %v809 = vpop.f32.mrb[0].mxu0
      %v810 = vadd.f32 %v757, %v809
      %v811 = vpop.f32.mrb[0].mxu0
      %v812 = vadd.f32 %v757, %v811
      %813 = vdwg.mxu0
      %v814 = vmax.f32 %v806, 0.0
      %v815 = vmax.f32 %v808, 0.0
      %v816 = vmax.f32 %v810, 0.0
      %v817 = vmax.f32 %v812, 0.0
      %v818 = vld [vmem:[%s6] sm:$0xf]
      %v819 = vld [vmem:[%s6 + $0x4] sm:$0xf]
      %v820 = vld [vmem:[%s6 + $0x8] sm:$0xf]
      %v821 = vld [vmem:[%s6 + $0xc] sm:$0xf]
      %v822 = vld [vmem:[%s6 + $0x10] sm:$0xf]
      %v823 = vld [vmem:[%s6 + $0x14] sm:$0xf]
      %v824 = vld [vmem:[%s6 + $0x18] sm:$0xf]
      %v825 = vld [vmem:[%s6 + $0x1c] sm:$0xf]
      %v826 = vpack.c.bf16 %v816, %v814
      %v827 = vpack.c.bf16 %v817, %v815
      %v828 = vld [vmem:[%s7] sm:$0xff]
      %v829 = vld [vmem:[%s7 + $0x8] sm:$0xff]
      %v830 = vld [vmem:[%s7 + $0x10] sm:$0xff]
      %v831 = vld [vmem:[%s7 + $0x18] sm:$0xff]
      %v832 = vld [vmem:[%s7 + $0x20] sm:$0xff]
      %v833 = vld [vmem:[%s7 + $0x28] sm:$0xff]
      %v834 = vld [vmem:[%s7 + $0x30] sm:$0xff]
      %v835 = vld [vmem:[%s7 + $0x38] sm:$0xff]
      %837 = vset.pattern.permute.xlu0 0
      %838 = vperm.xlu0 %837, %v828
      %v839 = vpop.permute.xlu0 %838
      %842 = vset.pattern.permute.xlu0 0
      %843 = vperm.xlu0 %842, %v829
      %v844 = vpop.permute.xlu0 %843
      %847 = vset.pattern.permute.xlu0 0
      %848 = vperm.xlu0 %847, %v830
      %v849 = vpop.permute.xlu0 %848
      %852 = vset.pattern.permute.xlu0 0
      %853 = vperm.xlu0 %852, %v831
      %v854 = vpop.permute.xlu0 %853
      %857 = vset.pattern.permute.xlu0 0
      %858 = vperm.xlu0 %857, %v832
      %v859 = vpop.permute.xlu0 %858
      %862 = vset.pattern.permute.xlu0 0
      %863 = vperm.xlu0 %862, %v833
      %v864 = vpop.permute.xlu0 %863
      %867 = vset.pattern.permute.xlu0 0
      %868 = vperm.xlu0 %867, %v834
      %v869 = vpop.permute.xlu0 %868
      %872 = vset.pattern.permute.xlu0 0
      %873 = vperm.xlu0 %872, %v835
      %v874 = vpop.permute.xlu0 %873
      %v884 = vunpack.c.l.b16 %v818
      %v885 = vunpack.c.l.b16 %v819
      %v886 = vunpack.c.l.b16 %v820
      %v887 = vunpack.c.l.b16 %v821
      %v888 = vunpack.c.l.b16 %v822
      %v889 = vunpack.c.l.b16 %v823
      %v890 = vunpack.c.l.b16 %v824
      %v891 = vunpack.c.l.b16 %v825
      %v892 = vpack.c.b16 %v885, %v884
      %v893 = vpack.c.b16 %v887, %v886
      %v894 = vpack.c.b16 %v889, %v888
      %v895 = vpack.c.b16 %v891, %v890
      %v897 = vsel %vm472, %v892, 0
      %v900 = vsel %vm472, %v893, 0
      %v903 = vsel %vm472, %v894, 0
      %v906 = vsel %vm472, %v895, 0
      %908 = vmatprep.subr.bf16.mxu0 %v827
      %909 = vmatpush1.bf16.msra.mxu0 %v826
      %910 = vmatprep.subr.bf16.mxu0 0
      %911 = vmatpush1.bf16.msra.mxu0 0
      %912 = vmatprep.subr.bf16.mxu0 0
      %913 = vmatpush1.bf16.msra.mxu0 0
      %914 = vmatprep.subr.bf16.mxu0 0
      %915 = vmatpush1.bf16.msra.mxu0 0
      %916 = vmatprep.subr.bf16.mxu0 0
      %917 = vmatpush1.bf16.msra.mxu0 0
      %918 = vmatprep.subr.bf16.mxu0 0
      %919 = vmatpush1.bf16.msra.mxu0 0
      %920 = vmatprep.subr.bf16.mxu0 0
      %921 = vmatpush1.bf16.msra.mxu0 0
      %922 = vmatprep.subr.bf16.mxu0 0
      %923 = vmatpush1.bf16.msra.mxu0 0
      %924 = vmatprep.subr.bf16.mxu0 0
      %925 = vmatpush1.bf16.msra.mxu0 0
      %926 = vmatprep.subr.bf16.mxu0 0
      %927 = vmatpush1.bf16.msra.mxu0 0
      %928 = vmatprep.subr.bf16.mxu0 0
      %929 = vmatpush1.bf16.msra.mxu0 0
      %930 = vmatprep.subr.bf16.mxu0 0
      %931 = vmatpush1.bf16.msra.mxu0 0
      %932 = vmatprep.subr.bf16.mxu0 0
      %933 = vmatpush1.bf16.msra.mxu0 0
      %934 = vmatprep.subr.bf16.mxu0 0
      %935 = vmatpush1.bf16.msra.mxu0 0
      %936 = vmatprep.subr.bf16.mxu0 0
      %937 = vmatpush1.bf16.msra.mxu0 0
      %938 = vmatprep.subr.bf16.mxu0 0
      %939 = vmatpush1.bf16.msra.mxu0 0
      %940 = vmatprep.mubr.bf16.mxu0 0
      %941 = vmatmul.mubr.bf16.gmra.mrb[0].mxu0 %v897
      %v942 = vpop.f32.mrb[0].mxu0
      %v943 = vadd.f32 %v839, %v942
      %v944 = vpop.f32.mrb[0].mxu0
      %v945 = vadd.f32 %v839, %v944
      %v946 = vpop.f32.mrb[0].mxu0
      %v947 = vadd.f32 %v844, %v946
      %v948 = vpop.f32.mrb[0].mxu0
      %v949 = vadd.f32 %v844, %v948
      %950 = vmatprep.mubr.bf16.mxu0 0
      %951 = vmatmul.mubr.bf16.gmra.mrb[0].mxu0 %v900
      %v952 = vpop.f32.mrb[0].mxu0
      %v953 = vadd.f32 %v849, %v952
      %v954 = vpop.f32.mrb[0].mxu0
      %v955 = vadd.f32 %v849, %v954
      %v956 = vpop.f32.mrb[0].mxu0
      %v957 = vadd.f32 %v854, %v956
      %v958 = vpop.f32.mrb[0].mxu0
      %v959 = vadd.f32 %v854, %v958
      %960 = vmatprep.mubr.bf16.mxu0 0
      %961 = vmatmul.mubr.bf16.gmra.mrb[0].mxu0 %v903
      %v962 = vpop.f32.mrb[0].mxu0
      %v963 = vadd.f32 %v859, %v962
      %v964 = vpop.f32.mrb[0].mxu0
      %v965 = vadd.f32 %v859, %v964
      %v966 = vpop.f32.mrb[0].mxu0
      %v967 = vadd.f32 %v864, %v966
      %v968 = vpop.f32.mrb[0].mxu0
      %v969 = vadd.f32 %v864, %v968
      %970 = vmatprep.mubr.bf16.mxu0 0
      %971 = vmatmul.mubr.bf16.gmra.mrb[0].mxu0 %v906
      %v972 = vpop.f32.mrb[0].mxu0
      %v973 = vadd.f32 %v869, %v972
      %v974 = vpop.f32.mrb[0].mxu0
      %v975 = vadd.f32 %v869, %v974
      %v976 = vpop.f32.mrb[0].mxu0
      %v977 = vadd.f32 %v874, %v976
      %v978 = vpop.f32.mrb[0].mxu0
      %v979 = vadd.f32 %v874, %v978
      %980 = vdwg.mxu0
      %v981 = vunpack.c.l.bf16 %v307
      %v982 = vunpack.c.h.bf16 %v307
      %v983 = vunpack.c.l.bf16 %v308
      %v984 = vunpack.c.h.bf16 %v308
      %v985 = vunpack.c.l.bf16 %v309
      %v986 = vunpack.c.h.bf16 %v309
      %v987 = vunpack.c.l.bf16 %v310
      %v988 = vunpack.c.h.bf16 %v310
      %v989 = vunpack.c.l.bf16 %v311
      %v990 = vunpack.c.h.bf16 %v311
      %v991 = vunpack.c.l.bf16 %v312
      %v992 = vunpack.c.h.bf16 %v312
      %v993 = vunpack.c.l.bf16 %v313
      %v994 = vunpack.c.h.bf16 %v313
      %v995 = vunpack.c.l.bf16 %v314
      %v996 = vunpack.c.h.bf16 %v314
      %v997 = vadd.f32 %v943, %v981
      %v998 = vadd.f32 %v945, %v982
      %v999 = vadd.f32 %v947, %v983
      %v1000 = vadd.f32 %v949, %v984
      %v1001 = vadd.f32 %v953, %v985
      %v1002 = vadd.f32 %v955, %v986
      %v1003 = vadd.f32 %v957, %v987
      %v1004 = vadd.f32 %v959, %v988
      %v1005 = vadd.f32 %v963, %v989
      %v1006 = vadd.f32 %v965, %v990
      %v1007 = vadd.f32 %v967, %v991
      %v1008 = vadd.f32 %v969, %v992
      %v1009 = vadd.f32 %v973, %v993
      %v1010 = vadd.f32 %v975, %v994
      %v1011 = vadd.f32 %v977, %v995
      %v1012 = vadd.f32 %v979, %v996
      %v1013 = vmax.f32 %v997, 0.0
      %v1014 = vmax.f32 %v998, 0.0
      %v1015 = vmax.f32 %v999, 0.0
      %v1016 = vmax.f32 %v1000, 0.0
      %v1017 = vmax.f32 %v1001, 0.0
      %v1018 = vmax.f32 %v1002, 0.0
      %v1019 = vmax.f32 %v1003, 0.0
      %v1020 = vmax.f32 %v1004, 0.0
      %v1021 = vmax.f32 %v1005, 0.0
      %v1022 = vmax.f32 %v1006, 0.0
      %v1023 = vmax.f32 %v1007, 0.0
      %v1024 = vmax.f32 %v1008, 0.0
      %v1025 = vmax.f32 %v1009, 0.0
      %v1026 = vmax.f32 %v1010, 0.0
      %v1027 = vmax.f32 %v1011, 0.0
      %v1028 = vmax.f32 %v1012, 0.0
      %1029 = vst [vmem:[%s305] sm:$0xff] %v1013
      %1030 = vst [vmem:[%s305 + $0x8] sm:$0xff] %v1014
      %1031 = vst [vmem:[%s305 + $0x10] sm:$0xff] %v1015
      %1032 = vst [vmem:[%s305 + $0x18] sm:$0xff] %v1016
      %1033 = vst [vmem:[%s305 + $0x20] sm:$0xff] %v1017
      %1034 = vst [vmem:[%s305 + $0x28] sm:$0xff] %v1018
      %1035 = vst [vmem:[%s305 + $0x30] sm:$0xff] %v1019
      %1036 = vst [vmem:[%s305 + $0x38] sm:$0xff] %v1020
      %1037 = vst [vmem:[%s305 + $0x40] sm:$0xff] %v1021
      %1038 = vst [vmem:[%s305 + $0x48] sm:$0xff] %v1022
      %1039 = vst [vmem:[%s305 + $0x50] sm:$0xff] %v1023
      %1040 = vst [vmem:[%s305 + $0x58] sm:$0xff] %v1024
      %1041 = vst [vmem:[%s305 + $0x60] sm:$0xff] %v1025
      %1042 = vst [vmem:[%s305 + $0x68] sm:$0xff] %v1026
      %1043 = vst [vmem:[%s305 + $0x70] sm:$0xff] %v1027
      %1044 = vst [vmem:[%s305 + $0x78] sm:$0xff] %v1028
      %p1045 = scmp.lt.s32.totalorder %s19, 1
      %s1046 = scalar_select %p1045, %s19, 1
      %s1047 = smul.addr %s1046, 16
      %s1048 = smul.addr %s1047, 8
      %s1049 = scalar_lea.vmem %s8, %s1048
      // Predicated region
      $region53: #{bottleneck_forward.1} parent=51 // pred_check
        %p1050 = pneg %p210
      $region54: #{bottleneck_forward.1} parent=51 // pred_check_branch
        %1052 = sbr.rel (%p1050) target = $region56
      $region55: #{bottleneck_forward.1} parent=51 // pred_region
        _
      $region56: #{bottleneck_forward.1} parent=51 // pred_fallthru
        _
    $region52: #{bottleneck_forward.1} parent=5 // pred_fallthru
      _
    %p1053 = scmp.le.s32.totalorder 2, %s14
    // Predicated region
    $region57: #{bottleneck_forward.1} parent=5 // pred_check
      %p1054 = pneg %p1053
    $region58: #{bottleneck_forward.1} parent=5 // pred_check_branch
      %1056 = sbr.rel (%p1054) target = $region60
    $region59: #{bottleneck_forward.1} parent=5 // pred_region
      %s1057 = ssub.s32 %s14, 2
      // Predicated region
      $region61: #{bottleneck_forward.1} parent=59 // pred_check
        %p1058 = pneg %p216
      $region62: #{bottleneck_forward.1} parent=59 // pred_check_branch
        %1060 = sbr.rel (%p1058) target = $region64
      $region63: #{bottleneck_forward.1} parent=59 // pred_region
        %p1061 = scmp.lt.s32.totalorder %s20, 1
        %s1062 = scalar_select %p1061, %s20, 1
        %s1063 = smul.addr %s1062, 16
        %s1064 = smul.addr %s1063, 8
        %s1065 = scalar_lea.vmem %s8, %s1064
      $region64: #{bottleneck_forward.1} parent=59 // pred_fallthru
        _
    $region60: #{bottleneck_forward.1} parent=5 // pred_fallthru
      _
  $region6: #{bottleneck_forward.1} parent=0 // loop_footer
    %s18 = sadd.s32 1, %s14
  $region7: #{bottleneck_forward.1} parent=0 // loop_footer_branch
    %13 = sbr.rel target = $region3
  $region8: #{bottleneck_forward.1} parent=0 // loop_exit
    _

</llo_original>
